<compile_context>
chip_gen: v6e
topology: v6e:2x2x1
jax: 0.10.0
libtpu: 0.0.40
codegen_flags: <defaults>
</compile_context>

<pallas_src>
import jax
import jax.numpy as jnp
from jax.experimental import pallas as pl
from jax.experimental.pallas import tpu as pltpu


def exu_kernel(x_ref, expw_ref, b_ref, o_ref):
    # x_ref: (TILE_B, F_in), expw_ref: (F_in, F_out) resident, b_ref: (1, F_in)
    shifted = x_ref[...] - b_ref[...]                      # broadcast over batch
    acc = jnp.dot(shifted, expw_ref[...], preferred_element_type=jnp.float32)
    o_ref[...] = jnp.clip(acc, 0.0, 1.0).astype(o_ref.dtype)


def _round_up(v, m):
    return ((v + m - 1) // m) * m


def _vmem_capacity_bytes():
    try:
        info = pltpu.get_tpu_info()
        cap = int(getattr(info, "vmem_capacity_bytes", 0))
        if cap > 0:
            return min(cap, 128 * 2**20)
    except Exception:
        pass
    return 64 * 2**20  # conservative fallback (v7x per-TC size)


def exu_forward(x, weight, bias, *, max_tile_b=2048):
    """x: (B, F_in) f32, weight: (F_in, F_out) f32, bias: (F_in,) f32."""
    B, F_in = x.shape
    F_out = weight.shape[1]
    dtype_bytes = jnp.dtype(x.dtype).itemsize

    # Hoisted: exp(weight) once per launch (tiny op), kernel sees it resident.
    expw = jnp.exp(weight)
    bias2d = bias.reshape(1, F_in)

    # ---- batch tile solved from a per-TensorCore VMEM budget ---------------
    vmem_cap = _vmem_capacity_bytes()
    vmem_budget = vmem_cap // 2            # headroom; also per-TC share on v7x
    resident = dtype_bytes * (2 * F_in * F_out + 2 * F_in)   # worst case (2 bufs)
    per_row = 2 * dtype_bytes * (F_in + F_out)               # 2-buffered x + out rows
    B_p8 = _round_up(max(B, 1), 8)
    rows_fit = max(8, ((vmem_budget - resident) // per_row) // 8 * 8)
    tile_b = min(max_tile_b, rows_fit, B_p8)
    # v7x megacore: guarantee >= 2 grid steps when the batch allows it so both
    # TensorCores get work under the "parallel" batch axis (neutral on v5e/v6e).
    if tile_b >= B_p8 and B_p8 >= 16:
        tile_b = _round_up(B_p8 // 2, 8)
    B_p = _round_up(B_p8, tile_b)
    x_p = x if B_p == B else jnp.pad(x, ((0, B_p - B), (0, 0)))
    grid = (B_p // tile_b,)

    # Scoped-VMEM limit with headroom, clamped under physical capacity.
    need = (2 * tile_b * (F_in + F_out) + 2 * F_in * F_out + 2 * F_in) * dtype_bytes
    vmem_limit = int(min(vmem_cap * 3 // 4, max(2 * need, 8 * 2**20)))

    out_shape = jax.ShapeDtypeStruct((B_p, F_out), x.dtype)
    cost = pl.CostEstimate(
        flops=2 * B_p * F_in * F_out,
        transcendentals=0,  # exp hoisted out of the kernel
        bytes_accessed=dtype_bytes * (B_p * F_in + F_in * F_out + F_in + B_p * F_out),
    )
    cparams = pltpu.CompilerParams(
        dimension_semantics=("parallel",),
        vmem_limit_bytes=vmem_limit,
    )

    def run(single_buffer_residents):
        pm = {"pipeline_mode": pl.Buffered(1)} if single_buffer_residents else {}
        return pl.pallas_call(
            exu_kernel,
            out_shape=out_shape,
            grid=grid,
            in_specs=[
                pl.BlockSpec((tile_b, F_in), lambda i: (i, 0)),
                pl.BlockSpec((F_in, F_out), lambda i: (0, 0), **pm),  # resident
                pl.BlockSpec((1, F_in), lambda i: (0, 0), **pm),      # resident
            ],
            out_specs=pl.BlockSpec((tile_b, F_out), lambda i: (i, 0)),
            compiler_params=cparams,
            cost_estimate=cost,
        )(x_p, expw, bias2d)

    try:
        out_p = run(True)
    except Exception:
        # This jax build rejected pl.Buffered(1) on the grid-invariant inputs;
        # fall back to default (double-buffered) specs -- correctness unchanged.
        out_p = run(False)

    return out_p if B_p == B else out_p[:B]


def truncated_normal(key, shape, mean=0.0, std=1.0, dtype=jnp.float32):
    # Deterministic analogue of the module's truncated_normal_ init:
    # standard normal truncated to (-2, 2), then scaled/shifted.
    t = jax.random.truncated_normal(key, -2.0, 2.0, shape, dtype)
    return t * std + mean


if __name__ == "__main__":
    B, F_IN, F_OUT = 16, 32, 64

    root = jax.random.PRNGKey(0)
    k_x, k_w, k_b = jax.random.split(root, 3)

    x = jax.random.normal(k_x, (B, F_IN), dtype=jnp.float32)
    weight = truncated_normal(k_w, (F_IN, F_OUT), mean=4.0, std=0.5)
    bias = truncated_normal(k_b, (F_IN,), std=0.5)

    out = exu_forward(x, weight, bias)
    jax.block_until_ready(out)

    # Reference check in plain JAX.
    ref = jnp.clip((x - bias[None, :]) @ jnp.exp(weight), 0.0, 1.0)
    assert out.shape == (B, F_OUT)
    assert jnp.allclose(out, ref, atol=1e-5, rtol=1e-5)

    print("KERNEL_OK")
</pallas_src>

<mosaic_0001>
module attributes {stable_mosaic.version = 11 : i64} {
  func.func @exu_kernel(%arg0: i32, %arg1: memref<8x32xf32, #tpu.memory_space<vmem>>, %arg2: memref<32x64xf32, #tpu.memory_space<vmem>>, %arg3: memref<1x32xf32, #tpu.memory_space<vmem>>, %arg4: memref<8x64xf32, #tpu.memory_space<vmem>>) attributes {dimension_semantics = [#tpu.dimension_semantics<parallel>], iteration_bounds = array<i64: 2>, scalar_prefetch = 0 : i64, scratch_operands = 0 : i64, tpu.core_type = #tpu.core_type<tc>, window_params = [{transform_indices = @transform_0, window_bounds = array<i64: 8, 32>}, {pipeline_mode = #tpu.pipeline_mode<synchronous>, transform_indices = @transform_1, window_bounds = array<i64: 32, 64>}, {pipeline_mode = #tpu.pipeline_mode<synchronous>, transform_indices = @transform_2, window_bounds = array<i64: 1, 32>}, {transform_indices = @transform_3, window_bounds = array<i64: 8, 64>}]} {
    %c0 = arith.constant 0 : index
    %c0_0 = arith.constant 0 : index
    %0 = vector.load %arg1[%c0, %c0_0] : memref<8x32xf32, #tpu.memory_space<vmem>>, vector<8x32xf32>
    %c0_1 = arith.constant 0 : index
    %c0_2 = arith.constant 0 : index
    %1 = vector.load %arg3[%c0_1, %c0_2] : memref<1x32xf32, #tpu.memory_space<vmem>>, vector<1x32xf32>
    %2 = vector.broadcast %1 : vector<1x32xf32> to vector<8x32xf32>
    %3 = arith.subf %0, %2 : vector<8x32xf32>
    %c0_3 = arith.constant 0 : index
    %c0_4 = arith.constant 0 : index
    %4 = vector.load %arg2[%c0_3, %c0_4] : memref<32x64xf32, #tpu.memory_space<vmem>>, vector<32x64xf32>
    %cst = arith.constant dense<0.000000e+00> : vector<8x64xf32>
    %5 = tpu.matmul %3, %4, %cst {dimension_numbers = #tpu.dot_dimension_numbers<[1], [0], [0], [1], [0, 0, 1, 1], [], []>} : vector<8x32xf32>, vector<32x64xf32>, vector<8x64xf32> -> vector<8x64xf32>
    %cst_5 = arith.constant 0.000000e+00 : f32
    %cst_6 = arith.constant 1.000000e+00 : f32
    %6 = vector.broadcast %cst_5 : f32 to vector<8x64xf32>
    %7 = arith.maximumf %6, %5 : vector<8x64xf32>
    %8 = vector.broadcast %cst_6 : f32 to vector<8x64xf32>
    %9 = arith.minimumf %8, %7 : vector<8x64xf32>
    %c0_7 = arith.constant 0 : index
    %c0_8 = arith.constant 0 : index
    %10 = vector.load %arg4[%c0_7, %c0_8] : memref<8x64xf32, #tpu.memory_space<vmem>>, vector<8x64xf32>
    tpu.vector_store %arg4[%c0_7, %c0_8], %9 {strides = array<i32>} : memref<8x64xf32, #tpu.memory_space<vmem>>, vector<8x64xf32>,
    return
  }
  func.func @transform_0(%arg0: i32) -> (i32, i32) {
    %c0_i32 = arith.constant 0 : i32
    %c0_i32_0 = arith.constant 0 : i32
    return %arg0, %c0_i32 : i32, i32
  }
  func.func @transform_1(%arg0: i32) -> (i32, i32) {
    %c0_i32 = arith.constant 0 : i32
    %c0_i32_0 = arith.constant 0 : i32
    %c0_i32_1 = arith.constant 0 : i32
    return %c0_i32, %c0_i32_0 : i32, i32
  }
  func.func @transform_2(%arg0: i32) -> (i32, i32) {
    %c0_i32 = arith.constant 0 : i32
    %c0_i32_0 = arith.constant 0 : i32
    %c0_i32_1 = arith.constant 0 : i32
    return %c0_i32, %c0_i32_0 : i32, i32
  }
  func.func @transform_3(%arg0: i32) -> (i32, i32) {
    %c0_i32 = arith.constant 0 : i32
    %c0_i32_0 = arith.constant 0 : i32
    return %arg0, %c0_i32 : i32, i32
  }
}

module attributes {stable_mosaic.version = 11 : i64} {
  func.func @exu_kernel(%arg0: i32, %arg1: memref<8x32xf32, #tpu.memory_space<vmem>>, %arg2: memref<32x64xf32, #tpu.memory_space<vmem>>, %arg3: memref<1x32xf32, #tpu.memory_space<vmem>>, %arg4: memref<8x64xf32, #tpu.memory_space<vmem>>) attributes {dimension_semantics = [#tpu.dimension_semantics<parallel>], iteration_bounds = array<i64: 2>, scalar_prefetch = 0 : i64, scratch_operands = 0 : i64, tpu.core_type = #tpu.core_type<tc>, window_params = [{transform_indices = @transform_0, window_bounds = array<i64: 8, 32>}, {pipeline_mode = #tpu.pipeline_mode<synchronous>, transform_indices = @transform_1, window_bounds = array<i64: 32, 64>}, {pipeline_mode = #tpu.pipeline_mode<synchronous>, transform_indices = @transform_2, window_bounds = array<i64: 1, 32>}, {transform_indices = @transform_3, window_bounds = array<i64: 8, 64>}]} {
    %c0 = arith.constant 0 : index
    %c0_0 = arith.constant 0 : index
    %0 = vector.load %arg1[%c0, %c0_0] : memref<8x32xf32, #tpu.memory_space<vmem>>, vector<8x32xf32>
    %c0_1 = arith.constant 0 : index
    %c0_2 = arith.constant 0 : index
    %1 = vector.load %arg3[%c0_1, %c0_2] : memref<1x32xf32, #tpu.memory_space<vmem>>, vector<1x32xf32>
    %2 = vector.broadcast %1 : vector<1x32xf32> to vector<8x32xf32>
    %3 = arith.subf %0, %2 : vector<8x32xf32>
    %c0_3 = arith.constant 0 : index
    %c0_4 = arith.constant 0 : index
    %4 = vector.load %arg2[%c0_3, %c0_4] : memref<32x64xf32, #tpu.memory_space<vmem>>, vector<32x64xf32>
    %cst = arith.constant dense<0.000000e+00> : vector<8x64xf32>
    %5 = tpu.matmul %3, %4, %cst {dimension_numbers = #tpu.dot_dimension_numbers<[1], [0], [0], [1], [0, 0, 1, 1], [], []>} : vector<8x32xf32>, vector<32x64xf32>, vector<8x64xf32> -> vector<8x64xf32>
    %cst_5 = arith.constant 0.000000e+00 : f32
    %cst_6 = arith.constant 1.000000e+00 : f32
    %6 = vector.broadcast %cst_5 : f32 to vector<8x64xf32>
    %7 = arith.maximumf %6, %5 : vector<8x64xf32>
    %8 = vector.broadcast %cst_6 : f32 to vector<8x64xf32>
    %9 = arith.minimumf %8, %7 : vector<8x64xf32>
    %c0_7 = arith.constant 0 : index
    %c0_8 = arith.constant 0 : index
    %10 = vector.load %arg4[%c0_7, %c0_8] : memref<8x64xf32, #tpu.memory_space<vmem>>, vector<8x64xf32>
    tpu.vector_store %arg4[%c0_7, %c0_8], %9 {strides = array<i32>} : memref<8x64xf32, #tpu.memory_space<vmem>>, vector<8x64xf32>,
    return
  }
  func.func @transform_0(%arg0: i32) -> (i32, i32) {
    %c0_i32 = arith.constant 0 : i32
    %c0_i32_0 = arith.constant 0 : i32
    return %arg0, %c0_i32 : i32, i32
  }
  func.func @transform_1(%arg0: i32) -> (i32, i32) {
    %c0_i32 = arith.constant 0 : i32
    %c0_i32_0 = arith.constant 0 : i32
    %c0_i32_1 = arith.constant 0 : i32
    return %c0_i32, %c0_i32_0 : i32, i32
  }
  func.func @transform_2(%arg0: i32) -> (i32, i32) {
    %c0_i32 = arith.constant 0 : i32
    %c0_i32_0 = arith.constant 0 : i32
    %c0_i32_1 = arith.constant 0 : i32
    return %c0_i32, %c0_i32_0 : i32, i32
  }
  func.func @transform_3(%arg0: i32) -> (i32, i32) {
    %c0_i32 = arith.constant 0 : i32
    %c0_i32_0 = arith.constant 0 : i32
    return %arg0, %c0_i32 : i32, i32
  }
}

</mosaic_0001>

<llo_original>
// kernel: tpu_custom_call.1
$region0: #{tpu_custom_call.1}
  #allocation0 [shape = 'u32[]', space=smem, size = 0x4, offset = 0x4, fixed_abs, tag = 'smem constant byte address 0x4 - core index']
  #allocation1 [shape = 'u32[144,128]{1,0:T(1,128)}', space=vmem, size = 0x12000, scoped, tag = 'internal scratch']
  %s0 = inlined_call_operand.hbm [shape: f32[16,32], index: 0, kind: input, shape index: {}]
  %s1 = inlined_call_operand.hbm [shape: f32[32,64], index: 1, kind: input, shape index: {}]
  %s2 = inlined_call_operand.vmem [shape: f32[1,32], index: 2, kind: input, shape index: {}]
  %s3 = inlined_call_operand.hbm [shape: f32[16,64], index: 3, kind: output, shape index: {}]
  %s4 = sld [smem:[#allocation0]]
  $region53: #{tpu_custom_call.1} parent=0
    _
  %s6 = ssub.s32 1, %s4
  %s7 = scalar_select 0, %s6, %s4
  $region1: #{tpu_custom_call.1} parent=0
    #allocation2 [shape = 'u8[8192]{0}', space=vmem, size = 0x2000, scoped, tag = 'input window, operand 0']
    #allocation3 [shape = 's32[2]{0}', space=sflag, size = 0x8, scoped, tag = 'scoped memory for tpu_custom_call.1']
    #allocation4 [shape = 's32[2]{0}', space=sflag, size = 0x8, scoped, tag = 'scoped memory for tpu_custom_call.1']
    #allocation5 [shape = 'u8[16384]{0}', space=vmem, size = 0x4000, scoped, tag = 'input window, operand 1, single buffered']
    #allocation6 [shape = 's32[1]{0}', space=sflag, size = 0x4, scoped, tag = 'scoped memory for tpu_custom_call.1']
    #allocation7 [shape = 'u8[8192]{0}', space=vmem, size = 0x2000, scoped, tag = 'output window, operand 0']
    %8 = vsyncpa [#allocation3], 0
    %s9 = scalar_lea.sflag [#allocation3], 1
    %10 = vsyncpa %s9, 0
    %11 = vsyncpa [#allocation6], 0
    %12 = vsyncpa [#allocation4], 0
    %s13 = scalar_lea.sflag [#allocation4], 1
    %14 = vsyncpa %s13, 0
    loop: start=0, step=1, limit=4
    $region2: #{tpu_custom_call.1} parent=1 // loop_pre_header
      _
    $region3: #{tpu_custom_call.1} parent=1 // loop_header
      %s16 = sphi 0, %s20
      %p17 = scmp.ge.s32.totalorder %s16, 4
      %s26 = sphi 0, %s28
      %s29 = sphi 0, %s26
      %s30 = sphi 0, %s29
      %s46 = sphi 0, %s30
      %s50 = sphi 0, %s50
      %s52 = sphi 0, %s50
      %s53 = sphi 0, %s52
      %s67 = sphi 0, %s53
      %s71 = sphi 0, %s71
      %s73 = sphi 0, %s71
      %s74 = sphi 0, %s73
      %s88 = sphi 0, %s74
      %s94 = sphi 0, %s96
      %s97 = sphi 0, %s94
      %s98 = sphi 0, %s97
      %s114 = sphi 0, %s98
    $region4: #{tpu_custom_call.1} parent=1 // loop_header_branch
      %19 = sbr.rel (%p17) target = $region8
    $region5: #{tpu_custom_call.1} parent=1 // loop_body
      %s21 = ssub.s32 %s16, 1
      %s22 = ssub.s32 %s16, 2
      %s23 = sadd.s32 %s16, 1
      %s24 = ssub.s32 %s16, %s23
      %p25 = scmp.eq.s32.totalorder %s24, 0
      %s27 = sadd.s32 %s26, 1
      %s28 = scalar_select %p25, %s26, %s27
      %p31 = pneg %p25
      %p32 = scmp.eq.s32.totalorder %s16, 1
      %p33 = por %p31, %p32
      %p34 = scmp.ne.s32.totalorder %s26, %s29
      %p35 = scmp.eq.s32.totalorder %s16, 0
      %p36 = por %p34, %p35
      %p37 = scmp.ne.s32.totalorder %s26, %s29
      %p38 = scmp.eq.s32.totalorder %s21, 1
      %p39 = por %p37, %p38
      %p40 = scmp.ne.s32.totalorder %s29, %s30
      %p41 = scmp.eq.s32.totalorder %s21, 0
      %p42 = por %p40, %p41
      %p43 = scmp.ne.s32.totalorder %s29, %s30
      %p44 = scmp.eq.s32.totalorder %s22, 1
      %p45 = por %p43, %p44
      %p47 = scmp.ne.s32.totalorder %s30, %s46
      %p48 = scmp.eq.s32.totalorder %s22, 0
      %p49 = por %p47, %p48
      %s51 = sadd.s32 %s50, 1
      %p54 = scmp.eq.s32.totalorder %s16, 1
      %p55 = scmp.ne.s32.totalorder %s50, %s52
      %p56 = scmp.eq.s32.totalorder %s16, 0
      %p57 = por %p55, %p56
      %p58 = scmp.ne.s32.totalorder %s50, %s52
      %p59 = scmp.eq.s32.totalorder %s21, 1
      %p60 = por %p58, %p59
      %p61 = scmp.ne.s32.totalorder %s52, %s53
      %p62 = scmp.eq.s32.totalorder %s21, 0
      %p63 = por %p61, %p62
      %p64 = scmp.ne.s32.totalorder %s52, %s53
      %p65 = scmp.eq.s32.totalorder %s22, 1
      %p66 = por %p64, %p65
      %p68 = scmp.ne.s32.totalorder %s53, %s67
      %p69 = scmp.eq.s32.totalorder %s22, 0
      %p70 = por %p68, %p69
      %s72 = sadd.s32 %s71, 1
      %p75 = scmp.eq.s32.totalorder %s16, 1
      %p76 = scmp.ne.s32.totalorder %s71, %s73
      %p77 = scmp.eq.s32.totalorder %s16, 0
      %p78 = por %p76, %p77
      %p79 = scmp.ne.s32.totalorder %s71, %s73
      %p80 = scmp.eq.s32.totalorder %s21, 1
      %p81 = por %p79, %p80
      %p82 = scmp.ne.s32.totalorder %s73, %s74
      %p83 = scmp.eq.s32.totalorder %s21, 0
      %p84 = por %p82, %p83
      %p85 = scmp.ne.s32.totalorder %s73, %s74
      %p86 = scmp.eq.s32.totalorder %s22, 1
      %p87 = por %p85, %p86
      %p89 = scmp.ne.s32.totalorder %s74, %s88
      %p90 = scmp.eq.s32.totalorder %s22, 0
      %p91 = por %p89, %p90
      %s92 = ssub.s32 %s16, %s23
      %p93 = scmp.eq.s32.totalorder %s92, 0
      %s95 = sadd.s32 %s94, 1
      %s96 = scalar_select %p93, %s94, %s95
      %p99 = pneg %p93
      %p100 = scmp.eq.s32.totalorder %s16, 1
      %p101 = por %p99, %p100
      %p102 = scmp.ne.s32.totalorder %s94, %s97
      %p103 = scmp.eq.s32.totalorder %s16, 0
      %p104 = por %p102, %p103
      %p105 = scmp.ne.s32.totalorder %s94, %s97
      %p106 = scmp.eq.s32.totalorder %s21, 1
      %p107 = por %p105, %p106
      %p108 = scmp.ne.s32.totalorder %s97, %s98
      %p109 = scmp.eq.s32.totalorder %s21, 0
      %p110 = por %p108, %p109
      %p111 = scmp.ne.s32.totalorder %s97, %s98
      %p112 = scmp.eq.s32.totalorder %s22, 1
      %p113 = por %p111, %p112
      %p115 = scmp.ne.s32.totalorder %s98, %s114
      %p116 = scmp.eq.s32.totalorder %s22, 0
      %p117 = por %p115, %p116
      %p118 = scmp.le.s32.totalorder 1, %s16
      %p119 = scmp.lt.s32.totalorder %s16, 3
      %p120 = pnand %p118, %p119
      %p121 = pneg %p120
      // Predicated region
      $region9: #{tpu_custom_call.1} parent=5 // pred_check
        _
      $region10: #{tpu_custom_call.1} parent=5 // pred_check_branch
        %123 = sbr.rel (%p120) target = $region12
      $region11: #{tpu_custom_call.1} parent=5 // pred_region
        %s124 = ssub.s32 %s16, 1
        // Predicated region
        $region13: #{tpu_custom_call.1} parent=11 // pred_check
          %p125 = pneg %p63
        $region14: #{tpu_custom_call.1} parent=11 // pred_check_branch
          %127 = sbr.rel (%p125) target = $region16
        $region15: #{tpu_custom_call.1} parent=11 // pred_region
          %s129 = ssub.s32 512, 512
          %130 = vsyncadd [#allocation6], %s129
          %s131 = sshll.u32 [#allocation5], 4
          %s132 = int_to_ptr.vmem [resolvable:$true] %s131
          %137 = dma.hbm_to_vmem [thread:$0]  %s1, 512, %s132, [#allocation6], 128, 128, 8
        $region16: #{tpu_custom_call.1} parent=11 // pred_fallthru
          _
        // Predicated region
        $region17: #{tpu_custom_call.1} parent=11 // pred_check
          %p138 = pneg %p84
        $region18: #{tpu_custom_call.1} parent=11 // pred_check_branch
          %140 = sbr.rel (%p138) target = $region20
        $region19: #{tpu_custom_call.1} parent=11 // pred_region
          _
        $region20: #{tpu_custom_call.1} parent=11 // pred_fallthru
          _
      $region12: #{tpu_custom_call.1} parent=5 // pred_fallthru
        _
      %p141 = scmp.lt.s32.totalorder %s16, 2
      // Predicated region
      $region21: #{tpu_custom_call.1} parent=5 // pred_check
        %p142 = pneg %p141
      $region22: #{tpu_custom_call.1} parent=5 // pred_check_branch
        %144 = sbr.rel (%p142) target = $region24
      $region23: #{tpu_custom_call.1} parent=5 // pred_region
        // Predicated region
        $region25: #{tpu_custom_call.1} parent=23 // pred_check
          %p145 = pneg %p36
        $region26: #{tpu_custom_call.1} parent=23 // pred_check_branch
          %147 = sbr.rel (%p145) target = $region28
        $region27: #{tpu_custom_call.1} parent=23 // pred_region
          %s148 = sand.u32 %s26, 1
          %s149 = scalar_lea.sflag [#allocation3], %s148
          %s150 = sand.u32 %s26, 1
          %s151 = smul.addr %s150, 8
          %s152 = scalar_lea.vmem [#allocation2], %s151
          %s154 = ssub.s32 128, 128
          %155 = vsyncadd %s149, %s154
          %s156 = smul.addr %s16, 128
          %s157 = scalar_lea.hbm %s0, %s156
          %s159 = sshll.u32 %s152, 4
          %s160 = int_to_ptr.vmem [resolvable:$true] %s159
          %162 = dma.hbm_to_vmem [thread:$0]  %s157, 128, %s160, %s149
        $region28: #{tpu_custom_call.1} parent=23 // pred_fallthru
          _
      $region24: #{tpu_custom_call.1} parent=5 // pred_fallthru
        _
      %p163 = scmp.le.s32.totalorder 1, %s16
      %p164 = scmp.lt.s32.totalorder %s16, 3
      %p165 = pnand %p163, %p164
      %p166 = pneg %p165
      // Predicated region
      $region29: #{tpu_custom_call.1} parent=5 // pred_check
        _
      $region30: #{tpu_custom_call.1} parent=5 // pred_check_branch
        %168 = sbr.rel (%p165) target = $region32
      $region31: #{tpu_custom_call.1} parent=5 // pred_region
        %s169 = ssub.s32 %s16, 1
        %s170 = sand.u32 %s29, 1
        %s171 = scalar_lea.sflag [#allocation3], %s170
        %s172 = sand.u32 %s29, 1
        %s173 = smul.addr %s172, 8
        %s174 = scalar_lea.vmem [#allocation2], %s173
        // Predicated region
        $region33: #{tpu_custom_call.1} parent=31 // pred_check
          %p175 = pneg %p42
        $region34: #{tpu_custom_call.1} parent=31 // pred_check_branch
          %177 = sbr.rel (%p175) target = $region36
        $region35: #{tpu_custom_call.1} parent=31 // pred_region
          %178 = dma.done %s171, 128
        $region36: #{tpu_custom_call.1} parent=31 // pred_fallthru
          _
        // Predicated region
        $region37: #{tpu_custom_call.1} parent=31 // pred_check
          %p179 = pneg %p63
        $region38: #{tpu_custom_call.1} parent=31 // pred_check_branch
          %181 = sbr.rel (%p179) target = $region40
        $region39: #{tpu_custom_call.1} parent=31 // pred_region
          %182 = dma.done [#allocation6], 512
        $region40: #{tpu_custom_call.1} parent=31 // pred_fallthru
          _
        %s183 = sand.u32 %s29, 1
        %s184 = scalar_lea.sflag [#allocation3], %s183
        %s185 = sand.u32 %s29, 1
        %s186 = smul.addr %s185, 8
        %s187 = scalar_lea.vmem [#allocation2], %s186
        %p188 = pneg %p42
        %p189 = pneg %p39
        %p190 = pneg %p63
        %p191 = pneg %p60
        %p192 = pneg %p84
        %p193 = pneg %p81
        %p194 = pneg %p110
        %p195 = pneg %p107
        %s196 = sand.u32 %s97, 1
        %s197 = scalar_lea.sflag [#allocation4], %s196
        %s198 = sand.u32 %s97, 1
        %s199 = smul.addr %s198, 8
        %s200 = scalar_lea.vmem [#allocation7], %s199
        %v201 = vld [vmem:[%s174] sm:$0xff]
        %v202 = vld [vmem:[%s2] sm:$0x1]
        %v204 = vlaneseq
        %v205 = vshrl.u32 %v204, 7
        %v206 = vsub.s32 0, %v205
        %v207 = vrot.slane %v202, %v206
        %v209 = vsub.f32 %v201, %v207
        %v210 = vld [vmem:[#allocation5] sm:$0xff]
        %v211 = vld [vmem:[#allocation5 + $0x8] sm:$0xff]
        %v212 = vld [vmem:[#allocation5 + $0x10] sm:$0xff]
        %v213 = vld [vmem:[#allocation5 + $0x18] sm:$0xff]
        %vm214 = vcmask 261120
        %v216 = vsel %vm214, %v209, 0
        %218 = vmatprep.subr.mxu0 0.0
        %219 = vmatpush1.msra.mxu0 0.0
        %220 = vmatprep.subr.mxu0 0.0
        %221 = vmatpush1.msra.mxu0 0.0
        %222 = vmatprep.subr.mxu0 0.0
        %223 = vmatpush1.msra.mxu0 0.0
        %224 = vmatprep.subr.mxu0 0.0
        %225 = vmatpush1.msra.mxu0 0.0
        %226 = vmatprep.subr.mxu0 0.0
        %227 = vmatpush1.msra.mxu0 0.0
        %228 = vmatprep.subr.mxu0 0.0
        %229 = vmatpush1.msra.mxu0 0.0
        %230 = vmatprep.subr.mxu0 0.0
        %231 = vmatpush1.msra.mxu0 0.0
        %232 = vmatprep.subr.mxu0 0.0
        %233 = vmatpush1.msra.mxu0 0.0
        %234 = vmatprep.subr.mxu0 0.0
        %235 = vmatpush1.msra.mxu0 0.0
        %236 = vmatprep.subr.mxu0 0.0
        %237 = vmatpush1.msra.mxu0 0.0
        %238 = vmatprep.subr.mxu0 0.0
        %239 = vmatpush1.msra.mxu0 0.0
        %240 = vmatprep.subr.mxu0 0.0
        %241 = vmatpush1.msra.mxu0 0.0
        %242 = vmatprep.subr.mxu0 0.0
        %243 = vmatpush1.msra.mxu0 %v213
        %244 = vmatprep.subr.mxu0 0.0
        %245 = vmatpush1.msra.mxu0 %v212
        %246 = vmatprep.subr.mxu0 0.0
        %247 = vmatpush1.msra.mxu0 %v211
        %248 = vmatprep.subr.mxu0 0.0
        %249 = vmatpush1.msra.mxu0 %v210
        %250 = vmatprep.subr.mxu0 0.0
        %251 = vmatpush2.msra.mxu0 0.0
        %252 = vmatprep.subr.mxu0 0.0
        %253 = vmatpush2.msra.mxu0 0.0
        %254 = vmatprep.subr.mxu0 0.0
        %255 = vmatpush2.msra.mxu0 0.0
        %256 = vmatprep.subr.mxu0 0.0
        %257 = vmatpush2.msra.mxu0 0.0
        %258 = vmatprep.subr.mxu0 0.0
        %259 = vmatpush2.msra.mxu0 0.0
        %260 = vmatprep.subr.mxu0 0.0
        %261 = vmatpush2.msra.mxu0 0.0
        %262 = vmatprep.subr.mxu0 0.0
        %263 = vmatpush2.msra.mxu0 0.0
        %264 = vmatprep.subr.mxu0 0.0
        %265 = vmatpush2.msra.mxu0 0.0
        %266 = vmatprep.subr.mxu0 0.0
        %267 = vmatpush2.msra.mxu0 0.0
        %268 = vmatprep.subr.mxu0 0.0
        %269 = vmatpush2.msra.mxu0 0.0
        %270 = vmatprep.subr.mxu0 0.0
        %271 = vmatpush2.msra.mxu0 0.0
        %272 = vmatprep.subr.mxu0 0.0
        %273 = vmatpush2.msra.mxu0 0.0
        %274 = vmatprep.subr.mxu0 0.0
        %275 = vmatpush2.msra.mxu0 0.0
        %276 = vmatprep.subr.mxu0 0.0
        %277 = vmatpush2.msra.mxu0 0.0
        %278 = vmatprep.subr.mxu0 0.0
        %279 = vmatpush2.msra.mxu0 0.0
        %280 = vmatprep.subr.mxu0 0.0
        %281 = vmatpush2.msra.mxu0 0.0
        %282 = vmatprep.mubr.f32.mxu0 0.0
        %283 = vmatmul.mubr.f32.gmra.mxu0 %v216
        %v284 = vpop.f32.mrf.mxu0
        %v285 = vadd.f32 0.0, %v284
        %v286 = vpop.f32.mrf.mxu0
        %287 = vdwg.mxu0
        %v288 = vmax.f32 %v285, 0.0
        %v289 = vmin.f32 %v288, 1.0
        %vm290 = vcmask 523264
        %291 = vst.msk [vmem:[%s200] sm:$0xff] %vm290, %v289
        %s292 = sand.u32 %s97, 1
        %s293 = scalar_lea.sflag [#allocation4], %s292
        %s294 = sand.u32 %s97, 1
        %s295 = smul.addr %s294, 8
        %s296 = scalar_lea.vmem [#allocation7], %s295
        // Predicated region
        $region41: #{tpu_custom_call.1} parent=31 // pred_check
          %p297 = pneg %p107
        $region42: #{tpu_custom_call.1} parent=31 // pred_check_branch
          %299 = sbr.rel (%p297) target = $region44
        $region43: #{tpu_custom_call.1} parent=31 // pred_region
          %s301 = ssub.s32 128, 128
          %302 = vsyncadd %s293, %s301
          %s303 = smul.addr %s21, 128
          %s304 = scalar_lea.hbm %s3, %s303
          %s306 = sshll.u32 %s296, 4
          %s307 = int_to_ptr.vmem [resolvable:$true] %s306
          %309 = dma.vmem_to_hbm [thread:$0]  %s307, 128, %s304, %s293
        $region44: #{tpu_custom_call.1} parent=31 // pred_fallthru
          _
      $region32: #{tpu_custom_call.1} parent=5 // pred_fallthru
        _
      %p310 = scmp.le.s32.totalorder 2, %s16
      // Predicated region
      $region45: #{tpu_custom_call.1} parent=5 // pred_check
        %p311 = pneg %p310
      $region46: #{tpu_custom_call.1} parent=5 // pred_check_branch
        %313 = sbr.rel (%p311) target = $region48
      $region47: #{tpu_custom_call.1} parent=5 // pred_region
        %s314 = ssub.s32 %s16, 2
        // Predicated region
        $region49: #{tpu_custom_call.1} parent=47 // pred_check
          %p315 = pneg %p113
        $region50: #{tpu_custom_call.1} parent=47 // pred_check_branch
          %317 = sbr.rel (%p315) target = $region52
        $region51: #{tpu_custom_call.1} parent=47 // pred_region
          %s318 = sand.u32 %s98, 1
          %s319 = scalar_lea.sflag [#allocation4], %s318
          %s320 = sand.u32 %s98, 1
          %s321 = smul.addr %s320, 8
          %s322 = scalar_lea.vmem [#allocation7], %s321
          %323 = dma.done %s319, 128
        $region52: #{tpu_custom_call.1} parent=47 // pred_fallthru
          _
      $region48: #{tpu_custom_call.1} parent=5 // pred_fallthru
        _
    $region6: #{tpu_custom_call.1} parent=1 // loop_footer
      %s20 = sadd.s32 1, %s16
    $region7: #{tpu_custom_call.1} parent=1 // loop_footer_branch
      %15 = sbr.rel target = $region3
    $region8: #{tpu_custom_call.1} parent=1 // loop_exit
      _
    %324 = vsyncpa [#allocation3], 1
    %s325 = scalar_lea.sflag [#allocation3], 1
    %326 = vsyncpa %s325, 1
    %327 = vsyncpa [#allocation6], 1
    %328 = vsyncpa [#allocation4], 1
    %s329 = scalar_lea.sflag [#allocation4], 1
    %330 = vsyncpa %s329, 1

// kernel: tpu_custom_call.1
$region0: #{tpu_custom_call.1}
  #allocation0 [shape = 'u32[]', space=smem, size = 0x4, offset = 0x4, fixed_abs, tag = 'smem constant byte address 0x4 - core index']
  #allocation1 [shape = 'u32[144,128]{1,0:T(1,128)}', space=vmem, size = 0x12000, scoped, tag = 'internal scratch']
  %s0 = inlined_call_operand.hbm [shape: f32[16,32], index: 0, kind: input, shape index: {}]
  %s1 = inlined_call_operand.hbm [shape: f32[32,64], index: 1, kind: input, shape index: {}]
  %s2 = inlined_call_operand.vmem [shape: f32[1,32], index: 2, kind: input, shape index: {}]
  %s3 = inlined_call_operand.hbm [shape: f32[16,64], index: 3, kind: output, shape index: {}]
  %s4 = sld [smem:[#allocation0]]
  $region53: #{tpu_custom_call.1} parent=0
    _
  %s6 = ssub.s32 1, %s4
  %s7 = scalar_select 0, %s6, %s4
  $region1: #{tpu_custom_call.1} parent=0
    #allocation2 [shape = 'u8[8192]{0}', space=vmem, size = 0x2000, scoped, tag = 'input window, operand 0']
    #allocation3 [shape = 's32[2]{0}', space=sflag, size = 0x8, scoped, tag = 'scoped memory for tpu_custom_call.1']
    #allocation4 [shape = 's32[2]{0}', space=sflag, size = 0x8, scoped, tag = 'scoped memory for tpu_custom_call.1']
    #allocation5 [shape = 'u8[16384]{0}', space=vmem, size = 0x4000, scoped, tag = 'input window, operand 1, single buffered']
    #allocation6 [shape = 's32[1]{0}', space=sflag, size = 0x4, scoped, tag = 'scoped memory for tpu_custom_call.1']
    #allocation7 [shape = 'u8[8192]{0}', space=vmem, size = 0x2000, scoped, tag = 'output window, operand 0']
    %8 = vsyncpa [#allocation3], 0
    %s9 = scalar_lea.sflag [#allocation3], 1
    %10 = vsyncpa %s9, 0
    %11 = vsyncpa [#allocation6], 0
    %12 = vsyncpa [#allocation4], 0
    %s13 = scalar_lea.sflag [#allocation4], 1
    %14 = vsyncpa %s13, 0
    loop: start=0, step=1, limit=4
    $region2: #{tpu_custom_call.1} parent=1 // loop_pre_header
      _
    $region3: #{tpu_custom_call.1} parent=1 // loop_header
      %s16 = sphi 0, %s20
      %p17 = scmp.ge.s32.totalorder %s16, 4
      %s26 = sphi 0, %s28
      %s29 = sphi 0, %s26
      %s30 = sphi 0, %s29
      %s46 = sphi 0, %s30
      %s50 = sphi 0, %s50
      %s52 = sphi 0, %s50
      %s53 = sphi 0, %s52
      %s67 = sphi 0, %s53
      %s71 = sphi 0, %s71
      %s73 = sphi 0, %s71
      %s74 = sphi 0, %s73
      %s88 = sphi 0, %s74
      %s94 = sphi 0, %s96
      %s97 = sphi 0, %s94
      %s98 = sphi 0, %s97
      %s114 = sphi 0, %s98
    $region4: #{tpu_custom_call.1} parent=1 // loop_header_branch
      %19 = sbr.rel (%p17) target = $region8
    $region5: #{tpu_custom_call.1} parent=1 // loop_body
      %s21 = ssub.s32 %s16, 1
      %s22 = ssub.s32 %s16, 2
      %s23 = sadd.s32 %s16, 1
      %s24 = ssub.s32 %s16, %s23
      %p25 = scmp.eq.s32.totalorder %s24, 0
      %s27 = sadd.s32 %s26, 1
      %s28 = scalar_select %p25, %s26, %s27
      %p31 = pneg %p25
      %p32 = scmp.eq.s32.totalorder %s16, 1
      %p33 = por %p31, %p32
      %p34 = scmp.ne.s32.totalorder %s26, %s29
      %p35 = scmp.eq.s32.totalorder %s16, 0
      %p36 = por %p34, %p35
      %p37 = scmp.ne.s32.totalorder %s26, %s29
      %p38 = scmp.eq.s32.totalorder %s21, 1
      %p39 = por %p37, %p38
      %p40 = scmp.ne.s32.totalorder %s29, %s30
      %p41 = scmp.eq.s32.totalorder %s21, 0
      %p42 = por %p40, %p41
      %p43 = scmp.ne.s32.totalorder %s29, %s30
      %p44 = scmp.eq.s32.totalorder %s22, 1
      %p45 = por %p43, %p44
      %p47 = scmp.ne.s32.totalorder %s30, %s46
      %p48 = scmp.eq.s32.totalorder %s22, 0
      %p49 = por %p47, %p48
      %s51 = sadd.s32 %s50, 1
      %p54 = scmp.eq.s32.totalorder %s16, 1
      %p55 = scmp.ne.s32.totalorder %s50, %s52
      %p56 = scmp.eq.s32.totalorder %s16, 0
      %p57 = por %p55, %p56
      %p58 = scmp.ne.s32.totalorder %s50, %s52
      %p59 = scmp.eq.s32.totalorder %s21, 1
      %p60 = por %p58, %p59
      %p61 = scmp.ne.s32.totalorder %s52, %s53
      %p62 = scmp.eq.s32.totalorder %s21, 0
      %p63 = por %p61, %p62
      %p64 = scmp.ne.s32.totalorder %s52, %s53
      %p65 = scmp.eq.s32.totalorder %s22, 1
      %p66 = por %p64, %p65
      %p68 = scmp.ne.s32.totalorder %s53, %s67
      %p69 = scmp.eq.s32.totalorder %s22, 0
      %p70 = por %p68, %p69
      %s72 = sadd.s32 %s71, 1
      %p75 = scmp.eq.s32.totalorder %s16, 1
      %p76 = scmp.ne.s32.totalorder %s71, %s73
      %p77 = scmp.eq.s32.totalorder %s16, 0
      %p78 = por %p76, %p77
      %p79 = scmp.ne.s32.totalorder %s71, %s73
      %p80 = scmp.eq.s32.totalorder %s21, 1
      %p81 = por %p79, %p80
      %p82 = scmp.ne.s32.totalorder %s73, %s74
      %p83 = scmp.eq.s32.totalorder %s21, 0
      %p84 = por %p82, %p83
      %p85 = scmp.ne.s32.totalorder %s73, %s74
      %p86 = scmp.eq.s32.totalorder %s22, 1
      %p87 = por %p85, %p86
      %p89 = scmp.ne.s32.totalorder %s74, %s88
      %p90 = scmp.eq.s32.totalorder %s22, 0
      %p91 = por %p89, %p90
      %s92 = ssub.s32 %s16, %s23
      %p93 = scmp.eq.s32.totalorder %s92, 0
      %s95 = sadd.s32 %s94, 1
      %s96 = scalar_select %p93, %s94, %s95
      %p99 = pneg %p93
      %p100 = scmp.eq.s32.totalorder %s16, 1
      %p101 = por %p99, %p100
      %p102 = scmp.ne.s32.totalorder %s94, %s97
      %p103 = scmp.eq.s32.totalorder %s16, 0
      %p104 = por %p102, %p103
      %p105 = scmp.ne.s32.totalorder %s94, %s97
      %p106 = scmp.eq.s32.totalorder %s21, 1
      %p107 = por %p105, %p106
      %p108 = scmp.ne.s32.totalorder %s97, %s98
      %p109 = scmp.eq.s32.totalorder %s21, 0
      %p110 = por %p108, %p109
      %p111 = scmp.ne.s32.totalorder %s97, %s98
      %p112 = scmp.eq.s32.totalorder %s22, 1
      %p113 = por %p111, %p112
      %p115 = scmp.ne.s32.totalorder %s98, %s114
      %p116 = scmp.eq.s32.totalorder %s22, 0
      %p117 = por %p115, %p116
      %p118 = scmp.le.s32.totalorder 1, %s16
      %p119 = scmp.lt.s32.totalorder %s16, 3
      %p120 = pnand %p118, %p119
      %p121 = pneg %p120
      // Predicated region
      $region9: #{tpu_custom_call.1} parent=5 // pred_check
        _
      $region10: #{tpu_custom_call.1} parent=5 // pred_check_branch
        %123 = sbr.rel (%p120) target = $region12
      $region11: #{tpu_custom_call.1} parent=5 // pred_region
        %s124 = ssub.s32 %s16, 1
        // Predicated region
        $region13: #{tpu_custom_call.1} parent=11 // pred_check
          %p125 = pneg %p63
        $region14: #{tpu_custom_call.1} parent=11 // pred_check_branch
          %127 = sbr.rel (%p125) target = $region16
        $region15: #{tpu_custom_call.1} parent=11 // pred_region
          %s129 = ssub.s32 512, 512
          %130 = vsyncadd [#allocation6], %s129
          %s131 = sshll.u32 [#allocation5], 4
          %s132 = int_to_ptr.vmem [resolvable:$true] %s131
          %137 = dma.hbm_to_vmem [thread:$0]  %s1, 512, %s132, [#allocation6], 128, 128, 8
        $region16: #{tpu_custom_call.1} parent=11 // pred_fallthru
          _
        // Predicated region
        $region17: #{tpu_custom_call.1} parent=11 // pred_check
          %p138 = pneg %p84
        $region18: #{tpu_custom_call.1} parent=11 // pred_check_branch
          %140 = sbr.rel (%p138) target = $region20
        $region19: #{tpu_custom_call.1} parent=11 // pred_region
          _
        $region20: #{tpu_custom_call.1} parent=11 // pred_fallthru
          _
      $region12: #{tpu_custom_call.1} parent=5 // pred_fallthru
        _
      %p141 = scmp.lt.s32.totalorder %s16, 2
      // Predicated region
      $region21: #{tpu_custom_call.1} parent=5 // pred_check
        %p142 = pneg %p141
      $region22: #{tpu_custom_call.1} parent=5 // pred_check_branch
        %144 = sbr.rel (%p142) target = $region24
      $region23: #{tpu_custom_call.1} parent=5 // pred_region
        // Predicated region
        $region25: #{tpu_custom_call.1} parent=23 // pred_check
          %p145 = pneg %p36
        $region26: #{tpu_custom_call.1} parent=23 // pred_check_branch
          %147 = sbr.rel (%p145) target = $region28
        $region27: #{tpu_custom_call.1} parent=23 // pred_region
          %s148 = sand.u32 %s26, 1
          %s149 = scalar_lea.sflag [#allocation3], %s148
          %s150 = sand.u32 %s26, 1
          %s151 = smul.addr %s150, 8
          %s152 = scalar_lea.vmem [#allocation2], %s151
          %s154 = ssub.s32 128, 128
          %155 = vsyncadd %s149, %s154
          %s156 = smul.addr %s16, 128
          %s157 = scalar_lea.hbm %s0, %s156
          %s159 = sshll.u32 %s152, 4
          %s160 = int_to_ptr.vmem [resolvable:$true] %s159
          %162 = dma.hbm_to_vmem [thread:$0]  %s157, 128, %s160, %s149
        $region28: #{tpu_custom_call.1} parent=23 // pred_fallthru
          _
      $region24: #{tpu_custom_call.1} parent=5 // pred_fallthru
        _
      %p163 = scmp.le.s32.totalorder 1, %s16
      %p164 = scmp.lt.s32.totalorder %s16, 3
      %p165 = pnand %p163, %p164
      %p166 = pneg %p165
      // Predicated region
      $region29: #{tpu_custom_call.1} parent=5 // pred_check
        _
      $region30: #{tpu_custom_call.1} parent=5 // pred_check_branch
        %168 = sbr.rel (%p165) target = $region32
      $region31: #{tpu_custom_call.1} parent=5 // pred_region
        %s169 = ssub.s32 %s16, 1
        %s170 = sand.u32 %s29, 1
        %s171 = scalar_lea.sflag [#allocation3], %s170
        %s172 = sand.u32 %s29, 1
        %s173 = smul.addr %s172, 8
        %s174 = scalar_lea.vmem [#allocation2], %s173
        // Predicated region
        $region33: #{tpu_custom_call.1} parent=31 // pred_check
          %p175 = pneg %p42
        $region34: #{tpu_custom_call.1} parent=31 // pred_check_branch
          %177 = sbr.rel (%p175) target = $region36
        $region35: #{tpu_custom_call.1} parent=31 // pred_region
          %178 = dma.done %s171, 128
        $region36: #{tpu_custom_call.1} parent=31 // pred_fallthru
          _
        // Predicated region
        $region37: #{tpu_custom_call.1} parent=31 // pred_check
          %p179 = pneg %p63
        $region38: #{tpu_custom_call.1} parent=31 // pred_check_branch
          %181 = sbr.rel (%p179) target = $region40
        $region39: #{tpu_custom_call.1} parent=31 // pred_region
          %182 = dma.done [#allocation6], 512
        $region40: #{tpu_custom_call.1} parent=31 // pred_fallthru
          _
        %s183 = sand.u32 %s29, 1
        %s184 = scalar_lea.sflag [#allocation3], %s183
        %s185 = sand.u32 %s29, 1
        %s186 = smul.addr %s185, 8
        %s187 = scalar_lea.vmem [#allocation2], %s186
        %p188 = pneg %p42
        %p189 = pneg %p39
        %p190 = pneg %p63
        %p191 = pneg %p60
        %p192 = pneg %p84
        %p193 = pneg %p81
        %p194 = pneg %p110
        %p195 = pneg %p107
        %s196 = sand.u32 %s97, 1
        %s197 = scalar_lea.sflag [#allocation4], %s196
        %s198 = sand.u32 %s97, 1
        %s199 = smul.addr %s198, 8
        %s200 = scalar_lea.vmem [#allocation7], %s199
        %v201 = vld [vmem:[%s174] sm:$0xff]
        %v202 = vld [vmem:[%s2] sm:$0x1]
        %v204 = vlaneseq
        %v205 = vshrl.u32 %v204, 7
        %v206 = vsub.s32 0, %v205
        %v207 = vrot.slane %v202, %v206
        %v209 = vsub.f32 %v201, %v207
        %v210 = vld [vmem:[#allocation5] sm:$0xff]
        %v211 = vld [vmem:[#allocation5 + $0x8] sm:$0xff]
        %v212 = vld [vmem:[#allocation5 + $0x10] sm:$0xff]
        %v213 = vld [vmem:[#allocation5 + $0x18] sm:$0xff]
        %vm214 = vcmask 261120
        %v216 = vsel %vm214, %v209, 0
        %218 = vmatprep.subr.mxu0 0.0
        %219 = vmatpush1.msra.mxu0 0.0
        %220 = vmatprep.subr.mxu0 0.0
        %221 = vmatpush1.msra.mxu0 0.0
        %222 = vmatprep.subr.mxu0 0.0
        %223 = vmatpush1.msra.mxu0 0.0
        %224 = vmatprep.subr.mxu0 0.0
        %225 = vmatpush1.msra.mxu0 0.0
        %226 = vmatprep.subr.mxu0 0.0
        %227 = vmatpush1.msra.mxu0 0.0
        %228 = vmatprep.subr.mxu0 0.0
        %229 = vmatpush1.msra.mxu0 0.0
        %230 = vmatprep.subr.mxu0 0.0
        %231 = vmatpush1.msra.mxu0 0.0
        %232 = vmatprep.subr.mxu0 0.0
        %233 = vmatpush1.msra.mxu0 0.0
        %234 = vmatprep.subr.mxu0 0.0
        %235 = vmatpush1.msra.mxu0 0.0
        %236 = vmatprep.subr.mxu0 0.0
        %237 = vmatpush1.msra.mxu0 0.0
        %238 = vmatprep.subr.mxu0 0.0
        %239 = vmatpush1.msra.mxu0 0.0
        %240 = vmatprep.subr.mxu0 0.0
        %241 = vmatpush1.msra.mxu0 0.0
        %242 = vmatprep.subr.mxu0 0.0
        %243 = vmatpush1.msra.mxu0 %v213
        %244 = vmatprep.subr.mxu0 0.0
        %245 = vmatpush1.msra.mxu0 %v212
        %246 = vmatprep.subr.mxu0 0.0
        %247 = vmatpush1.msra.mxu0 %v211
        %248 = vmatprep.subr.mxu0 0.0
        %249 = vmatpush1.msra.mxu0 %v210
        %250 = vmatprep.subr.mxu0 0.0
        %251 = vmatpush2.msra.mxu0 0.0
        %252 = vmatprep.subr.mxu0 0.0
        %253 = vmatpush2.msra.mxu0 0.0
        %254 = vmatprep.subr.mxu0 0.0
        %255 = vmatpush2.msra.mxu0 0.0
        %256 = vmatprep.subr.mxu0 0.0
        %257 = vmatpush2.msra.mxu0 0.0
        %258 = vmatprep.subr.mxu0 0.0
        %259 = vmatpush2.msra.mxu0 0.0
        %260 = vmatprep.subr.mxu0 0.0
        %261 = vmatpush2.msra.mxu0 0.0
        %262 = vmatprep.subr.mxu0 0.0
        %263 = vmatpush2.msra.mxu0 0.0
        %264 = vmatprep.subr.mxu0 0.0
        %265 = vmatpush2.msra.mxu0 0.0
        %266 = vmatprep.subr.mxu0 0.0
        %267 = vmatpush2.msra.mxu0 0.0
        %268 = vmatprep.subr.mxu0 0.0
        %269 = vmatpush2.msra.mxu0 0.0
        %270 = vmatprep.subr.mxu0 0.0
        %271 = vmatpush2.msra.mxu0 0.0
        %272 = vmatprep.subr.mxu0 0.0
        %273 = vmatpush2.msra.mxu0 0.0
        %274 = vmatprep.subr.mxu0 0.0
        %275 = vmatpush2.msra.mxu0 0.0
        %276 = vmatprep.subr.mxu0 0.0
        %277 = vmatpush2.msra.mxu0 0.0
        %278 = vmatprep.subr.mxu0 0.0
        %279 = vmatpush2.msra.mxu0 0.0
        %280 = vmatprep.subr.mxu0 0.0
        %281 = vmatpush2.msra.mxu0 0.0
        %282 = vmatprep.mubr.f32.mxu0 0.0
        %283 = vmatmul.mubr.f32.gmra.mxu0 %v216
        %v284 = vpop.f32.mrf.mxu0
        %v285 = vadd.f32 0.0, %v284
        %v286 = vpop.f32.mrf.mxu0
        %287 = vdwg.mxu0
        %v288 = vmax.f32 %v285, 0.0
        %v289 = vmin.f32 %v288, 1.0
        %vm290 = vcmask 523264
        %291 = vst.msk [vmem:[%s200] sm:$0xff] %vm290, %v289
        %s292 = sand.u32 %s97, 1
        %s293 = scalar_lea.sflag [#allocation4], %s292
        %s294 = sand.u32 %s97, 1
        %s295 = smul.addr %s294, 8
        %s296 = scalar_lea.vmem [#allocation7], %s295
        // Predicated region
        $region41: #{tpu_custom_call.1} parent=31 // pred_check
          %p297 = pneg %p107
        $region42: #{tpu_custom_call.1} parent=31 // pred_check_branch
          %299 = sbr.rel (%p297) target = $region44
        $region43: #{tpu_custom_call.1} parent=31 // pred_region
          %s301 = ssub.s32 128, 128
          %302 = vsyncadd %s293, %s301
          %s303 = smul.addr %s21, 128
          %s304 = scalar_lea.hbm %s3, %s303
          %s306 = sshll.u32 %s296, 4
          %s307 = int_to_ptr.vmem [resolvable:$true] %s306
          %309 = dma.vmem_to_hbm [thread:$0]  %s307, 128, %s304, %s293
        $region44: #{tpu_custom_call.1} parent=31 // pred_fallthru
          _
      $region32: #{tpu_custom_call.1} parent=5 // pred_fallthru
        _
      %p310 = scmp.le.s32.totalorder 2, %s16
      // Predicated region
      $region45: #{tpu_custom_call.1} parent=5 // pred_check
        %p311 = pneg %p310
      $region46: #{tpu_custom_call.1} parent=5 // pred_check_branch
        %313 = sbr.rel (%p311) target = $region48
      $region47: #{tpu_custom_call.1} parent=5 // pred_region
        %s314 = ssub.s32 %s16, 2
        // Predicated region
        $region49: #{tpu_custom_call.1} parent=47 // pred_check
          %p315 = pneg %p113
        $region50: #{tpu_custom_call.1} parent=47 // pred_check_branch
          %317 = sbr.rel (%p315) target = $region52
        $region51: #{tpu_custom_call.1} parent=47 // pred_region
          %s318 = sand.u32 %s98, 1
          %s319 = scalar_lea.sflag [#allocation4], %s318
          %s320 = sand.u32 %s98, 1
          %s321 = smul.addr %s320, 8
          %s322 = scalar_lea.vmem [#allocation7], %s321
          %323 = dma.done %s319, 128
        $region52: #{tpu_custom_call.1} parent=47 // pred_fallthru
          _
      $region48: #{tpu_custom_call.1} parent=5 // pred_fallthru
        _
    $region6: #{tpu_custom_call.1} parent=1 // loop_footer
      %s20 = sadd.s32 1, %s16
    $region7: #{tpu_custom_call.1} parent=1 // loop_footer_branch
      %15 = sbr.rel target = $region3
    $region8: #{tpu_custom_call.1} parent=1 // loop_exit
      _
    %324 = vsyncpa [#allocation3], 1
    %s325 = scalar_lea.sflag [#allocation3], 1
    %326 = vsyncpa %s325, 1
    %327 = vsyncpa [#allocation6], 1
    %328 = vsyncpa [#allocation4], 1
    %s329 = scalar_lea.sflag [#allocation4], 1
    %330 = vsyncpa %s329, 1

</llo_original>
